<compile_context>
chip_gen: v7x
topology: tpu7x:2x2x1
jax: 0.10.0
libtpu: 0.0.40
codegen_flags: <defaults>
</compile_context>

<pallas_src>
import functools

import jax
import jax.numpy as jnp
from jax.experimental import pallas as pl
from jax.experimental.pallas import tpu as pltpu


def _round_up(v, m):
    return ((v + m - 1) // m) * m


def _sublane_multiple(dtype):
    # second-minor block multiple required by Mosaic layout per element width
    return {4: 8, 2: 16, 1: 32}.get(jnp.dtype(dtype).itemsize, 8)


def _vmem_capacity():
    try:
        return int(pltpu.get_tpu_info().vmem_capacity_bytes)
    except Exception:  # fall back to the smallest generation (v7x: 64 MiB/TC)
        return 64 << 20


# ----------------------------- single-pass kernel ---------------------------
def _ln_gn_kernel(x_ref, gb_ref, o_ref, *, inv_hw, inv_hwm1, eps):
    # x_ref:  (tr, HW)  one row == one (n, c) group (last block may be partial)
    # gb_ref: (tr, 2)   column 0 = gamma, column 1 = beta (per row)
    x = x_ref[...].astype(jnp.float32)
    mean = jnp.sum(x, axis=-1, keepdims=True) * jnp.float32(inv_hw)
    d = x - mean
    var = jnp.sum(d * d, axis=-1, keepdims=True) * jnp.float32(inv_hwm1)
    scale = gb_ref[:, 0:1] * jax.lax.rsqrt(var + jnp.float32(eps))
    # write directly from the centered value; no separate shift term needed
    o_ref[...] = (d * scale + gb_ref[:, 1:2]).astype(o_ref.dtype)


# --------------------------- two-pass (large HW) path ------------------------
def _stats_kernel(x_ref, st_ref, s_sc, q_sc, *, hw, tc, inv_hw, inv_hwm1, eps):
    j = pl.program_id(1)

    @pl.when(j == 0)
    def _():
        s_sc[...] = jnp.zeros_like(s_sc)
        q_sc[...] = jnp.zeros_like(q_sc)

    x = x_ref[...].astype(jnp.float32)
    if hw % tc != 0:  # static branch: mask the ragged final column tile only
        col = jax.lax.broadcasted_iota(jnp.int32, x.shape, 1) + j * tc
        x = jnp.where(col < hw, x, jnp.float32(0.0))
    s_sc[...] += jnp.sum(x, axis=-1, keepdims=True)
    q_sc[...] += jnp.sum(x * x, axis=-1, keepdims=True)

    @pl.when(j == pl.num_programs(1) - 1)
    def _():
        mean = s_sc[...] * jnp.float32(inv_hw)
        var = (q_sc[...] - s_sc[...] * mean) * jnp.float32(inv_hwm1)
        rstd = jax.lax.rsqrt(jnp.maximum(var, 0.0) + jnp.float32(eps))
        st_ref[:, 0:1] = mean
        st_ref[:, 1:2] = rstd


def _norm_kernel(x_ref, ss_ref, o_ref):
    # ss_ref: (tr, 2) column 0 = scale (gamma*rstd), column 1 = shift
    x = x_ref[...].astype(jnp.float32)
    o_ref[...] = (x * ss_ref[:, 0:1] + ss_ref[:, 1:2]).astype(o_ref.dtype)


# --------------------------------- wrapper -----------------------------------
def ln_with_gn_n2(x, gamma, beta, *, eps=1e-3, force_two_pass=False, col_tile=None):
    """Eval-mode forward of LnWithGN_N2.  x: (N,C,H,W); gamma, beta: (C,)."""
    N, C, H, W = x.shape
    R, HW = N * C, H * W
    in_item = jnp.dtype(x.dtype).itemsize
    sub = _sublane_multiple(x.dtype)

    x2 = x.reshape(R, HW)  # free for contiguous NCHW

    # per-row affine parameters (gamma/beta tiled over N) — tiny O(R) arrays
    gamma_rows = jnp.tile(gamma.astype(jnp.float32), (N,))
    beta_rows = jnp.tile(beta.astype(jnp.float32), (N,))

    inv_hw = 1.0 / HW
    inv_hwm1 = 1.0 / max(HW - 1, 1)  # guard H*W == 1 (torch.var would be NaN)

    vmem_cap = _vmem_capacity()
    budget = int(0.6 * vmem_cap)          # honest headroom for compiler scratch
    vmem_limit = int(0.85 * vmem_cap)

    # honest per-row VMEM footprint of a full-width row tile:
    #   2x double-buffered input + 2x double-buffered output
    #   + 2x lane-padded (tr,2) f32 gamma/beta block (512 B/row)
    #   + ~2 tile-sized f32 temporaries (upcast x / centered d)
    per_row = 2 * in_item * HW + 2 * in_item * HW + 2 * 512 + 8 * HW
    use_two_pass = force_two_pass or (per_row * sub > budget)

    if not use_two_pass:
        gb = jnp.stack([gamma_rows, beta_rows], axis=-1)  # (R, 2), one DMA/step

        # budget-driven row tile, capped at ~8 MiB of input per tile
        tr = max(sub, (budget // per_row) // sub * sub)
        tr = min(tr, max(sub, ((8 << 20) // (HW * in_item)) // sub * sub))
        tr = min(tr, _round_up(R, sub))
        rt = pl.cdiv(R, tr)
        # prefer >= 4 grid steps: pipelining depth + v7x megacore row sharding
        if rt < 4 and R >= 4 * sub:
            tr = max(sub, (R // 4) // sub * sub)
            rt = pl.cdiv(R, tr)

        kernel = functools.partial(
            _ln_gn_kernel, inv_hw=inv_hw, inv_hwm1=inv_hwm1, eps=eps)
        y2 = pl.pallas_call(
            kernel,
            out_shape=jax.ShapeDtypeStruct((R, HW), x.dtype),
            grid_spec=pltpu.PrefetchScalarGridSpec(
                num_scalar_prefetch=0,
                grid=(rt,),
                in_specs=[
                    pl.BlockSpec((tr, HW), lambda i: (i, 0)),
                    pl.BlockSpec((tr, 2), lambda i: (i, 0)),
                ],
                out_specs=pl.BlockSpec((tr, HW), lambda i: (i, 0)),
            ),
            compiler_params=pltpu.CompilerParams(
                dimension_semantics=("parallel",),
                vmem_limit_bytes=vmem_limit,
            ),
            cost_estimate=pl.CostEstimate(
                flops=6 * R * HW,
                transcendentals=R,
                bytes_accessed=2 * R * HW * in_item + 8 * R,
            ),
        )(x2, gb)
        return y2.reshape(N, C, H, W)

    # ---------------- column-tiled two-pass path (very large H*W) -----------
    tr2 = min(256, _round_up(R, sub))
    if col_tile is not None:
        tc = _round_up(int(col_tile), 128)
    else:
        # pass-2 dominates: 2x in + 2x out double-buffered + 1 f32 temp per elem
        tc = budget // (tr2 * (4 * in_item + 4))
        tc = min(tc, (8 << 20) // (tr2 * in_item))
        tc = (tc // 128) * 128
    tc = max(128, min(tc, _round_up(HW, 128)))
    rt2 = pl.cdiv(R, tr2)
    ct = pl.cdiv(HW, tc)

    stats_kernel = functools.partial(
        _stats_kernel, hw=HW, tc=tc, inv_hw=inv_hw, inv_hwm1=inv_hwm1, eps=eps)
    stats = pl.pallas_call(
        stats_kernel,
        out_shape=jax.ShapeDtypeStruct((R, 2), jnp.float32),
        grid_spec=pltpu.PrefetchScalarGridSpec(
            num_scalar_prefetch=0,
            grid=(rt2, ct),
            in_specs=[pl.BlockSpec((tr2, tc), lambda i, j: (i, j))],
            out_specs=pl.BlockSpec((tr2, 2), lambda i, j: (i, 0)),
            scratch_shapes=[pltpu.VMEM((tr2, 1), jnp.float32),
                            pltpu.VMEM((tr2, 1), jnp.float32)],
        ),
        compiler_params=pltpu.CompilerParams(
            dimension_semantics=("parallel", "arbitrary"),
            vmem_limit_bytes=vmem_limit,
        ),
    )(x2)

    # fold affine + rstd into per-row scale/shift (tiny O(R) XLA ops)
    mean = stats[:, 0]
    rstd = stats[:, 1]
    scale = gamma_rows * rstd
    shift = beta_rows - mean * scale
    ss = jnp.stack([scale, shift], axis=-1)  # (R, 2)

    y2 = pl.pallas_call(
        _norm_kernel,
        out_shape=jax.ShapeDtypeStruct((R, HW), x.dtype),
        grid_spec=pltpu.PrefetchScalarGridSpec(
            num_scalar_prefetch=0,
            grid=(rt2, ct),
            in_specs=[
                pl.BlockSpec((tr2, tc), lambda i, j: (i, j)),
                pl.BlockSpec((tr2, 2), lambda i, j: (i, 0)),
            ],
            out_specs=pl.BlockSpec((tr2, tc), lambda i, j: (i, j)),
        ),
        compiler_params=pltpu.CompilerParams(
            dimension_semantics=("parallel", "parallel"),
            vmem_limit_bytes=vmem_limit,
        ),
        cost_estimate=pl.CostEstimate(
            flops=2 * R * HW,
            transcendentals=0,
            bytes_accessed=2 * R * HW * in_item + 8 * R,
        ),
    )(x2, ss)
    return y2.reshape(N, C, H, W)


# -------------------------------- reference ----------------------------------
def _reference(x, gamma, beta, eps=1e-3):
    xf = x.astype(jnp.float32)
    mean = jnp.mean(xf, axis=(2, 3), keepdims=True)
    var = jnp.var(xf, axis=(2, 3), keepdims=True, ddof=1)  # unbiased, like torch.var
    y = (xf - mean) / jnp.sqrt(var + eps)
    y = gamma.reshape(1, -1, 1, 1) * y + beta.reshape(1, -1, 1, 1)
    return y.astype(x.dtype)


if __name__ == "__main__":
    key = jax.random.PRNGKey(0)

    cases = [
        # (shape, dtype, extra kwargs, atol)
        ((2, 4, 16, 16), jnp.float32, {}, 1e-5),                       # primary
        ((4, 8, 16, 16), jnp.float32, {}, 1e-5),                       # >=4 row tiles (grid/pipelining)
        ((2, 3, 14, 14), jnp.float32, {}, 1e-5),                       # ragged rows + non-128 spatial
        ((2, 4, 16, 16), jnp.bfloat16, {}, 1e-1),                      # bf16 I/O (halves HBM bytes)
        ((2, 4, 20, 20), jnp.float32,
         dict(force_two_pass=True, col_tile=128), 1e-4),               # column-tiled large-HW path
    ]

    for idx, (shape, dtype, kwargs, atol) in enumerate(cases):
        N, C, H, W = shape
        kx, key = jax.random.split(key)
        x = jax.random.normal(kx, shape, dtype=jnp.float32).astype(dtype)

        # deterministic parameter init (synthetic, not loaded from checkpoint)
        gamma = jnp.linspace(0.5, 1.5, C, dtype=jnp.float32)
        beta = jnp.linspace(-0.2, 0.2, C, dtype=jnp.float32)

        y = jax.block_until_ready(ln_with_gn_n2(x, gamma, beta, eps=1e-3, **kwargs))
        y_ref = _reference(x, gamma, beta, eps=1e-3)
        err = float(jnp.max(jnp.abs(y.astype(jnp.float32) - y_ref.astype(jnp.float32))))
        assert err <= atol, (idx, shape, str(dtype), err)

    print("KERNEL_OK")
</pallas_src>

<mosaic_0001>
module attributes {stable_mosaic.version = 11 : i64} {
  func.func @_ln_gn_kernel(%arg0: i32, %arg1: memref<8x256xf32, #tpu.memory_space<vmem>>, %arg2: memref<8x2xf32, #tpu.memory_space<vmem>>, %arg3: memref<8x256xf32, #tpu.memory_space<vmem>>) attributes {dimension_semantics = [#tpu.dimension_semantics<parallel>], iteration_bounds = array<i64: 1>, scalar_prefetch = 0 : i64, scratch_operands = 0 : i64, tpu.core_type = #tpu.core_type<tc>, window_params = [{transform_indices = @transform_0, window_bounds = array<i64: 8, 256>}, {transform_indices = @transform_1, window_bounds = array<i64: 8, 2>}, {transform_indices = @transform_2, window_bounds = array<i64: 8, 256>}]} {
    %c0 = arith.constant 0 : index
    %c0_0 = arith.constant 0 : index
    %0 = vector.load %arg1[%c0, %c0_0] : memref<8x256xf32, #tpu.memory_space<vmem>>, vector<8x256xf32>
    %cst = arith.constant dense<0.000000e+00> : vector<8xf32>
    %1 = vector.multi_reduction <add>, %0, %cst [1] : vector<8x256xf32> to vector<8xf32>
    %2 = vector.shape_cast %1 : vector<8xf32> to vector<8x1xf32>
    %cst_1 = arith.constant 3.906250e-03 : f32
    %3 = vector.broadcast %cst_1 : f32 to vector<8x1xf32>
    %4 = arith.mulf %2, %3 : vector<8x1xf32>
    %5 = vector.broadcast %4 : vector<8x1xf32> to vector<8x256xf32>
    %6 = arith.subf %0, %5 : vector<8x256xf32>
    %7 = arith.mulf %6, %6 : vector<8x256xf32>
    %cst_2 = arith.constant dense<0.000000e+00> : vector<8xf32>
    %8 = vector.multi_reduction <add>, %7, %cst_2 [1] : vector<8x256xf32> to vector<8xf32>
    %9 = vector.shape_cast %8 : vector<8xf32> to vector<8x1xf32>
    %cst_3 = arith.constant 0.00392156886 : f32
    %10 = vector.broadcast %cst_3 : f32 to vector<8x1xf32>
    %11 = arith.mulf %9, %10 : vector<8x1xf32>
    %c0_4 = arith.constant 0 : index
    %c0_5 = arith.constant 0 : index
    %12 = vector.load %arg2[%c0_4, %c0_5] : memref<8x2xf32, #tpu.memory_space<vmem>>, vector<8x1xf32>
    %cst_6 = arith.constant 1.000000e-03 : f32
    %13 = vector.broadcast %cst_6 : f32 to vector<8x1xf32>
    %14 = arith.addf %11, %13 : vector<8x1xf32>
    %15 = math.rsqrt %14 : vector<8x1xf32>
    %16 = arith.mulf %12, %15 : vector<8x1xf32>
    %17 = vector.broadcast %16 : vector<8x1xf32> to vector<8x256xf32>
    %18 = arith.mulf %6, %17 : vector<8x256xf32>
    %c0_7 = arith.constant 0 : index
    %c1 = arith.constant 1 : index
    %19 = vector.load %arg2[%c0_7, %c1] : memref<8x2xf32, #tpu.memory_space<vmem>>, vector<8x1xf32>
    %20 = vector.broadcast %19 : vector<8x1xf32> to vector<8x256xf32>
    %21 = arith.addf %18, %20 : vector<8x256xf32>
    %c0_8 = arith.constant 0 : index
    %c0_9 = arith.constant 0 : index
    %22 = vector.load %arg3[%c0_8, %c0_9] : memref<8x256xf32, #tpu.memory_space<vmem>>, vector<8x256xf32>
    tpu.vector_store %arg3[%c0_8, %c0_9], %21 {strides = array<i32>} : memref<8x256xf32, #tpu.memory_space<vmem>>, vector<8x256xf32>,
    return
  }
  func.func @transform_0(%arg0: i32) -> (i32, i32) {
    %c0_i32 = arith.constant 0 : i32
    %c0_i32_0 = arith.constant 0 : i32
    return %arg0, %c0_i32 : i32, i32
  }
  func.func @transform_1(%arg0: i32) -> (i32, i32) {
    %c0_i32 = arith.constant 0 : i32
    %c0_i32_0 = arith.constant 0 : i32
    return %arg0, %c0_i32 : i32, i32
  }
  func.func @transform_2(%arg0: i32) -> (i32, i32) {
    %c0_i32 = arith.constant 0 : i32
    %c0_i32_0 = arith.constant 0 : i32
    return %arg0, %c0_i32 : i32, i32
  }
}

</mosaic_0001>

<llo_original>
// kernel: tpu_custom_call.1
$region0: #{tpu_custom_call.1}
  #allocation0 [shape = 'u32[]', space=smem, size = 0x4, offset = 0x4, fixed_abs, tag = 'smem constant byte address 0x4 - core index']
  #allocation1 [shape = 'u32[144,128]{1,0:T(1,128)}', space=vmem, size = 0x12000, scoped, tag = 'internal scratch']
  %s0 = inlined_call_operand.hbm [shape: f32[8,256], index: 0, kind: input, shape index: {}]
  %s1 = inlined_call_operand.vmem [shape: f32[8,2], index: 1, kind: input, shape index: {}]
  %s2 = inlined_call_operand.hbm [shape: f32[8,256], index: 2, kind: output, shape index: {}]
  %s3 = sld [smem:[#allocation0]]
  $region22: #{tpu_custom_call.1} parent=0
    _
  %s5 = ssub.s32 1, %s3
  %s6 = scalar_select 0, %s5, %s3
  $region1: #{tpu_custom_call.1} parent=0
    #allocation2 [shape = 'u8[8192]{0}', space=vmem, size = 0x2000, scoped, tag = 'input window, operand 0, single buffered']
    #allocation3 [shape = 's32[1]{0}', space=sflag, size = 0x4, scoped, tag = 'scoped memory for tpu_custom_call.1']
    #allocation4 [shape = 's32[1]{0}', space=sflag, size = 0x4, scoped, tag = 'scoped memory for tpu_custom_call.1']
    #allocation5 [shape = 'u8[8192]{0}', space=vmem, size = 0x2000, scoped, tag = 'output window, operand 0, single buffered']
    %7 = vsyncpa [#allocation3], 0
    %8 = vsyncpa [#allocation4], 0
    // Predicated region
    $region2: #{tpu_custom_call.1} parent=1 // pred_check
      _
    $region3: #{tpu_custom_call.1} parent=1 // pred_check_branch
      %10 = sbr.rel (0) target = $region5
    $region4: #{tpu_custom_call.1} parent=1 // pred_region
      %s12 = ssub.s32 256, 256
      %13 = vsyncadd [#allocation3], %s12
      %s15 = sshll.u32 [#allocation2], 4
      %s16 = int_to_ptr.vmem [resolvable:$true] %s15
      %18 = dma.hbm_to_vmem [thread:$0]  %s0, 256, %s16, [#allocation3]
    $region5: #{tpu_custom_call.1} parent=1 // pred_fallthru
      _
    // Predicated region
    $region6: #{tpu_custom_call.1} parent=1 // pred_check
      _
    $region7: #{tpu_custom_call.1} parent=1 // pred_check_branch
      %20 = sbr.rel (0) target = $region9
    $region8: #{tpu_custom_call.1} parent=1 // pred_region
      _
    $region9: #{tpu_custom_call.1} parent=1 // pred_fallthru
      _
    // Predicated region
    $region10: #{tpu_custom_call.1} parent=1 // pred_check
      _
    $region11: #{tpu_custom_call.1} parent=1 // pred_check_branch
      %22 = sbr.rel (0) target = $region13
    $region12: #{tpu_custom_call.1} parent=1 // pred_region
      %23 = dma.done [#allocation3], 256
    $region13: #{tpu_custom_call.1} parent=1 // pred_fallthru
      _
    %v24 = vld [vmem:[#allocation2] sm:$0xff]
    %v25 = vld [vmem:[#allocation2 + $0x8] sm:$0xff]
    %v26 = vadd.f32 %v24, %v25
    %27 = vadd.xlane.f32.xlu0 %v26
    %v28 = vpop.xlane.xlu0 %27
    %v29 = vmul.f32 %v28, 0.00390625
    %v30 = vsub.f32 %v24, %v29
    %v31 = vsub.f32 %v25, %v29
    %v32 = vmul.f32 %v30, %v30
    %v33 = vmul.f32 %v31, %v31
    %v34 = vadd.f32 %v32, %v33
    %35 = vadd.xlane.f32.xlu0 %v34
    %v36 = vpop.xlane.xlu0 %35
    %v37 = vmul.f32 %v36, 0.003921569
    %v38 = vld [vmem:[%s1] sm:$0xff]
    %v39 = vadd.f32 %v37, 0.001
    %v40 = vrsqrt.pop %v39
    %v41 = vmul.f32 %v38, %v40
    %43 = vset.pattern.permute.xlu0 0
    %44 = vperm.xlu0 %43, %v41
    %v45 = vpop.permute.xlu0 %44
    %v47 = vmul.f32 %v30, %v45
    %v48 = vmul.f32 %v31, %v45
    %50 = vset.pattern.permute.xlu0 1
    %51 = vperm.xlu0 %50, %v38
    %v52 = vpop.permute.xlu0 %51
    %v54 = vadd.f32 %v47, %v52
    %v55 = vadd.f32 %v48, %v52
    %56 = vst [vmem:[#allocation5] sm:$0xff] %v54
    %57 = vst [vmem:[#allocation5 + $0x8] sm:$0xff] %v55
    // Predicated region
    $region14: #{tpu_custom_call.1} parent=1 // pred_check
      _
    $region15: #{tpu_custom_call.1} parent=1 // pred_check_branch
      %59 = sbr.rel (0) target = $region17
    $region16: #{tpu_custom_call.1} parent=1 // pred_region
      %s61 = ssub.s32 256, 256
      %62 = vsyncadd [#allocation4], %s61
      %s64 = sshll.u32 [#allocation5], 4
      %s65 = int_to_ptr.vmem [resolvable:$true] %s64
      %67 = dma.vmem_to_hbm [thread:$0]  %s65, 256, %s2, [#allocation4]
    $region17: #{tpu_custom_call.1} parent=1 // pred_fallthru
      _
    // Predicated region
    $region18: #{tpu_custom_call.1} parent=1 // pred_check
      _
    $region19: #{tpu_custom_call.1} parent=1 // pred_check_branch
      %69 = sbr.rel (0) target = $region21
    $region20: #{tpu_custom_call.1} parent=1 // pred_region
      %70 = dma.done [#allocation4], 256
    $region21: #{tpu_custom_call.1} parent=1 // pred_fallthru
      _
    %71 = vsyncpa [#allocation3], 1
    %72 = vsyncpa [#allocation4], 1

</llo_original>
